<compile_context>
chip_gen: v6e
topology: v6e:2x2x1
jax: 0.10.0
libtpu: 0.0.40
codegen_flags: <defaults>
</compile_context>

<pallas_src>
import numpy as np
import jax
import jax.numpy as jnp
from jax.experimental import pallas as pl
from jax.experimental.pallas import tpu as pltpu


_LANE = 128
_FULL_K_MAX = 2048   # largest contraction kept as one un-tiled K block
_FULL_M_MAX = 512    # largest batch kept as one un-tiled M block
_MAX_TK = 2048


def _round_up(x, m):
    return ((x + m - 1) // m) * m


# ----------------------------------------------------------------------------
# Pallas kernels
# ----------------------------------------------------------------------------
def _matmul_bias_kernel_2d(x_ref, wt_ref, b_ref, o_ref):
    """Single K-step: out = X @ W^T + bias. No scratch, no init/finalize gates."""
    x = x_ref[...].astype(wt_ref.dtype)          # in-kernel cast (VPU, hidden)
    acc = jnp.dot(x, wt_ref[...], preferred_element_type=jnp.float32)
    o_ref[...] = (acc + b_ref[...]).astype(o_ref.dtype)


def _matmul_bias_kernel_3d(x_ref, wt_ref, b_ref, o_ref, acc_ref):
    """Tiled-K accumulation with f32 VMEM scratch; bias added once at the end."""
    k = pl.program_id(2)

    @pl.when(k == 0)
    def _init():
        acc_ref[...] = jnp.zeros_like(acc_ref)

    acc_ref[...] += jnp.dot(
        x_ref[...].astype(wt_ref.dtype), wt_ref[...],
        preferred_element_type=jnp.float32,
    )

    @pl.when(k == pl.num_programs(2) - 1)
    def _finalize():
        o_ref[...] = (acc_ref[...] + b_ref[...]).astype(o_ref.dtype)


# ----------------------------------------------------------------------------
# Tile selection
# ----------------------------------------------------------------------------
def _pick_tm(B):
    """Return (tm, Mp). Full-M block for modest batches (no padding at all)."""
    if B <= _FULL_M_MAX:
        return B, B
    best_tm, best_pad = None, None
    for c in (512, 256, 128):            # multiples of 16 (bf16 sublane packing)
        pad = _round_up(B, c) - B
        if best_pad is None or pad < best_pad:
            best_tm, best_pad = c, pad
    return best_tm, _round_up(B, best_tm)


def _pick_tn(Np, m_steps):
    tn = next(c for c in (512, 256, 128) if Np % c == 0)
    # v7x megacore: avoid collapsing to a 1x1 parallel grid when N can be split.
    if m_steps == 1 and Np // tn == 1 and Np >= 256:
        tn = 256 if (Np % 256 == 0 and Np // 256 >= 2) else 128
    return tn


def _pick_tk(Kp):
    """Largest 128-multiple divisor of Kp, capped at _MAX_TK (Kp % 128 == 0)."""
    for c in range(_MAX_TK, 127, -128):
        if Kp % c == 0:
            return c
    return 128


# ----------------------------------------------------------------------------
# Kernel wrapper:  out = X @ W^T + bias
# ----------------------------------------------------------------------------
def equivariant_linear_pallas(x, wtb, bb, n_out):
    """x: (B, K) f32. wtb: (Kp, Np) pre-padded/pre-cast W^T. bb: (1, Np) f32.

    Returns (B, n_out) f32.
    """
    B, K = x.shape
    Kp, Np = wtb.shape
    assert bb.shape == (1, Np)
    assert Kp >= K and Kp % _LANE == 0 and Np % _LANE == 0

    tm, Mp = _pick_tm(B)
    m_steps = Mp // tm
    tn = _pick_tn(Np, m_steps)
    n_steps = Np // tn

    # Single fused pad of X; skipped entirely when shapes already align.
    # (Padded X columns hit zero rows of W^T, padded rows are sliced off.)
    if Mp != B or Kp != K:
        x = jnp.pad(x, ((0, Mp - B), (0, Kp - K)))

    single_k = Kp <= _FULL_K_MAX
    tk = Kp if single_k else _pick_tk(Kp)
    k_steps = Kp // tk

    wbytes = jnp.dtype(wtb.dtype).itemsize
    # Double-buffered VMEM footprint of one pipeline stage.
    vmem_bytes = 2 * (tm * tk * 4 + tk * tn * wbytes + tm * tn * 4 + tn * 4)
    if not single_k:
        vmem_bytes += tm * tn * 4
    vmem_limit = int(min(64 * 1024 * 1024, max(32 * 1024 * 1024, 2 * vmem_bytes)))

    cost = pl.CostEstimate(
        flops=2 * Mp * Kp * Np,
        transcendentals=0,
        bytes_accessed=(
            4 * Mp * Kp * n_steps            # X (f32) re-streamed per N tile
            + wbytes * Kp * Np * m_steps     # W^T re-streamed per M tile
            + 4 * Mp * Np                    # output written once
            + 4 * Np * m_steps * n_steps     # bias tiles
        ),
    )

    if single_k:
        out_padded = pl.pallas_call(
            _matmul_bias_kernel_2d,
            out_shape=jax.ShapeDtypeStruct((Mp, Np), jnp.float32),
            grid_spec=pltpu.PrefetchScalarGridSpec(
                num_scalar_prefetch=0,
                grid=(m_steps, n_steps),
                in_specs=[
                    pl.BlockSpec((tm, tk), lambda i, j: (i, 0)),   # X tile
                    pl.BlockSpec((tk, tn), lambda i, j: (0, j)),   # W^T tile
                    pl.BlockSpec((1, tn), lambda i, j: (0, j)),    # bias tile
                ],
                out_specs=pl.BlockSpec((tm, tn), lambda i, j: (i, j)),
            ),
            compiler_params=pltpu.CompilerParams(
                dimension_semantics=("parallel", "parallel"),
                vmem_limit_bytes=vmem_limit,
            ),
            cost_estimate=cost,
        )(x, wtb, bb)
    else:
        out_padded = pl.pallas_call(
            _matmul_bias_kernel_3d,
            out_shape=jax.ShapeDtypeStruct((Mp, Np), jnp.float32),
            grid_spec=pltpu.PrefetchScalarGridSpec(
                num_scalar_prefetch=0,
                grid=(m_steps, n_steps, k_steps),
                in_specs=[
                    pl.BlockSpec((tm, tk), lambda i, j, k: (i, k)),   # X tile
                    pl.BlockSpec((tk, tn), lambda i, j, k: (k, j)),   # W^T tile
                    pl.BlockSpec((1, tn), lambda i, j, k: (0, j)),    # bias tile
                ],
                out_specs=pl.BlockSpec((tm, tn), lambda i, j, k: (i, j)),
                scratch_shapes=[pltpu.VMEM((tm, tn), jnp.float32)],
            ),
            compiler_params=pltpu.CompilerParams(
                dimension_semantics=("parallel", "parallel", "arbitrary"),
                vmem_limit_bytes=vmem_limit,
            ),
            cost_estimate=cost,
        )(x, wtb, bb)

    if Mp != B or Np != n_out:
        out_padded = out_padded[:B, :n_out]
    return out_padded


# ----------------------------------------------------------------------------
# Module glue (parameter setup + equivariant weight matrix construction)
# ----------------------------------------------------------------------------
def init_params(key, in_channels_list, out_channels, weight_patterns):
    """Deterministic synthetic init mimicking nn.init.kaiming_uniform_."""
    degree = int(weight_patterns[0].shape[0])
    signed = min(int(p.min()) for p in weight_patterns) < 0
    weights = []
    for c, p in zip(in_channels_list, weight_patterns):
        pmax = int(np.abs(p).max())
        key, sub = jax.random.split(key)
        fan_in = c * pmax
        bound = float(np.sqrt(6.0 / fan_in)) if fan_in > 0 else 0.0
        w = jax.random.uniform(
            sub, (out_channels, c, pmax), jnp.float32, minval=-bound, maxval=bound
        )
        weights.append(w)
    biases = None if signed else jnp.zeros((out_channels,), jnp.float32)
    return weights, biases, degree, signed


def build_weight_matrix_t(weights, weight_patterns, out_channels, degree):
    """W^T in (K, N) layout: wt[f*C + c, d*O + o] = sign(p[d,f]) * w[o, c, |p[d,f]|-1].

    Transpose of the PyTorch weight_matrix(); building it directly avoids a
    per-forward transpose / extra HBM copy in the hot path.
    """
    blocks = []
    for w, p in zip(weights, weight_patterns):
        p = jnp.asarray(p)
        F_l = p.shape[1]
        C_l = w.shape[1]
        if w.size > 0:
            gathered = w[..., jnp.abs(p) - 1]                           # (O, C, degree, F)
            signed = jnp.sign(p)[None, None, ...].astype(w.dtype) * gathered
            blk = jnp.transpose(signed, (3, 1, 2, 0)).reshape(          # (F, C, degree, O)
                F_l * C_l, degree * out_channels
            )
        else:
            blk = jnp.zeros((C_l * F_l, out_channels * degree), jnp.float32)
        blocks.append(blk)
    return jnp.concatenate(blocks, axis=0)                              # (K, N)


def build_bias_vector(biases, out_channels, degree):
    if biases is not None:
        return jnp.tile(biases, degree)       # == torch .repeat(degree)
    return jnp.zeros((out_channels * degree,), jnp.float32)


def make_forward_fn(weights, biases, weight_patterns, out_channels, degree,
                    weight_dtype=jnp.bfloat16):
    """Precompute (once per parameter update) the padded W^T / bias and return
    a jitted forward fn. All weight-side pad/cast work is hoisted out of the
    per-call path; the forward only (optionally) pads X and runs the kernel.
    """
    wt = build_weight_matrix_t(weights, weight_patterns, out_channels, degree)
    b = build_bias_vector(biases, out_channels, degree)
    K, N = wt.shape
    Kp = _round_up(K, _LANE)
    Np = _round_up(N, _LANE)

    # One-time pad + cast (bf16 by default: MXU-native, half the weight stream).
    wtb = jnp.pad(wt, ((0, Kp - K), (0, Np - N))).astype(weight_dtype)
    bb = jnp.pad(b, (0, Np - N)).astype(jnp.float32).reshape(1, Np)
    wtb = jax.block_until_ready(wtb)
    bb = jax.block_until_ready(bb)

    @jax.jit
    def forward(x):
        return equivariant_linear_pallas(x, wtb, bb, n_out=N)

    return forward


# ----------------------------------------------------------------------------
# Demo / self-check
# ----------------------------------------------------------------------------
if __name__ == "__main__":
    key = jax.random.PRNGKey(0)

    # Small synthetic config: two previous layers, degree-4 signed perm-irrep.
    out_channels = 5
    in_channels_list = [4, 3]
    degree = 4
    feats = [4, 6]      # features per previous layer
    n_shared = [3, 5]   # number of distinct shared weights per layer

    # Deterministic signed weight-sharing patterns (values in +/-{1..n_shared}).
    weight_patterns = []
    for F_l, nw in zip(feats, n_shared):
        d_idx = np.arange(degree)[:, None]
        f_idx = np.arange(F_l)[None, :]
        mag = ((d_idx + f_idx) % nw) + 1
        sgn = np.where(((d_idx * 3 + f_idx) % 2) == 0, 1, -1)
        weight_patterns.append((mag * sgn).astype(np.int32))

    weights, biases, degree, signed = init_params(
        key, in_channels_list, out_channels, weight_patterns
    )

    # Input: (batch, agg_ch_feats), agg_ch_feats = sum_l F_l * C_l = 16 + 18 = 34
    agg = sum(f * c for f, c in zip(feats, in_channels_list))
    key, xkey = jax.random.split(key)
    x = jax.random.normal(xkey, (2, agg), jnp.float32)

    forward = make_forward_fn(weights, biases, weight_patterns, out_channels, degree)
    out = forward(x)
    out = jax.block_until_ready(out)
    assert out.shape == (2, out_channels * degree)
    out_np = np.asarray(out, dtype=np.float64)

    # ----- Reference (pure numpy, float64) of the PyTorch semantics -----
    W_ref_blocks = []
    for w, p in zip(weights, weight_patterns):
        w_np = np.asarray(w, dtype=np.float64)
        gathered = w_np[..., np.abs(p) - 1]
        blk = (np.sign(p)[None, None, ...] * gathered).transpose(2, 0, 3, 1)
        W_ref_blocks.append(blk.reshape(out_channels * degree, -1))
    W_ref = np.concatenate(W_ref_blocks, axis=1)                     # (N, K)
    b_ref = (
        np.tile(np.asarray(biases, dtype=np.float64), degree)
        if biases is not None
        else np.zeros(out_channels * degree)
    )
    x_f64 = np.asarray(x, dtype=np.float64)

    # 1) Strict check against a reference with the same bf16 rounding of X / W
    #    (verifies padding / tiling / bias logic exactly).
    def _bf16_round(a):
        return np.asarray(jnp.asarray(a, jnp.bfloat16)).astype(np.float64)

    ref_q = _bf16_round(x) @ _bf16_round(W_ref).T + b_ref[None, :]
    np.testing.assert_allclose(out_np, ref_q, rtol=1e-5, atol=1e-5)

    # 2) Loose check against the exact f64 module semantics (bf16 quantization
    #    of X and W is the only error source; accumulation is f32 on the MXU).
    ref = x_f64 @ W_ref.T + b_ref[None, :]
    np.testing.assert_allclose(out_np, ref, rtol=5e-2, atol=1e-1)

    print("KERNEL_OK")
</pallas_src>

<mosaic_0001>
module attributes {stable_mosaic.version = 11 : i64} {
  func.func @_matmul_bias_kernel_2d(%arg0: i32, %arg1: i32, %arg2: memref<2x128xf32, #tpu.memory_space<vmem>>, %arg3: memref<128x128xbf16, #tpu.memory_space<vmem>>, %arg4: memref<1x128xf32, #tpu.memory_space<vmem>>, %arg5: memref<2x128xf32, #tpu.memory_space<vmem>>) attributes {dimension_semantics = [#tpu.dimension_semantics<parallel>, #tpu.dimension_semantics<parallel>], iteration_bounds = array<i64: 1, 1>, scalar_prefetch = 0 : i64, scratch_operands = 0 : i64, tpu.core_type = #tpu.core_type<tc>, window_params = [{transform_indices = @transform_0, window_bounds = array<i64: 2, 128>}, {transform_indices = @transform_1, window_bounds = array<i64: 128, 128>}, {transform_indices = @transform_2, window_bounds = array<i64: 1, 128>}, {transform_indices = @transform_3, window_bounds = array<i64: 2, 128>}]} {
    %c0 = arith.constant 0 : index
    %c0_0 = arith.constant 0 : index
    %0 = vector.load %arg2[%c0, %c0_0] : memref<2x128xf32, #tpu.memory_space<vmem>>, vector<2x128xf32>
    %1 = arith.truncf %0 : vector<2x128xf32> to vector<2x128xbf16>
    %c0_1 = arith.constant 0 : index
    %c0_2 = arith.constant 0 : index
    %2 = vector.load %arg3[%c0_1, %c0_2] : memref<128x128xbf16, #tpu.memory_space<vmem>>, vector<128x128xbf16>
    %cst = arith.constant dense<0.000000e+00> : vector<2x128xf32>
    %3 = tpu.matmul %1, %2, %cst {dimension_numbers = #tpu.dot_dimension_numbers<[1], [0], [0], [1], [0, 0, 1, 1], [], []>} : vector<2x128xbf16>, vector<128x128xbf16>, vector<2x128xf32> -> vector<2x128xf32>
    %c0_3 = arith.constant 0 : index
    %c0_4 = arith.constant 0 : index
    %4 = vector.load %arg4[%c0_3, %c0_4] : memref<1x128xf32, #tpu.memory_space<vmem>>, vector<1x128xf32>
    %5 = vector.broadcast %4 : vector<1x128xf32> to vector<2x128xf32>
    %6 = arith.addf %3, %5 : vector<2x128xf32>
    %c0_5 = arith.constant 0 : index
    %c0_6 = arith.constant 0 : index
    %7 = vector.load %arg5[%c0_5, %c0_6] : memref<2x128xf32, #tpu.memory_space<vmem>>, vector<2x128xf32>
    tpu.vector_store %arg5[%c0_5, %c0_6], %6 {strides = array<i32>} : memref<2x128xf32, #tpu.memory_space<vmem>>, vector<2x128xf32>,
    return
  }
  func.func @transform_0(%arg0: i32, %arg1: i32) -> (i32, i32) {
    %c0_i32 = arith.constant 0 : i32
    %c0_i32_0 = arith.constant 0 : i32
    return %arg0, %c0_i32 : i32, i32
  }
  func.func @transform_1(%arg0: i32, %arg1: i32) -> (i32, i32) {
    %c0_i32 = arith.constant 0 : i32
    %c0_i32_0 = arith.constant 0 : i32
    return %c0_i32, %arg1 : i32, i32
  }
  func.func @transform_2(%arg0: i32, %arg1: i32) -> (i32, i32) {
    %c0_i32 = arith.constant 0 : i32
    %c0_i32_0 = arith.constant 0 : i32
    return %c0_i32, %arg1 : i32, i32
  }
  func.func @transform_3(%arg0: i32, %arg1: i32) -> (i32, i32) {
    %c0_i32 = arith.constant 0 : i32
    return %arg0, %arg1 : i32, i32
  }
}

</mosaic_0001>

<llo_original>
// kernel: forward.1
$region0: #{forward.1}
  #allocation0 [shape = 'u32[]', space=smem, size = 0x4, offset = 0x4, fixed_abs, tag = 'smem constant byte address 0x4 - core index']
  #allocation1 [shape = 'u32[144,128]{1,0:T(1,128)}', space=vmem, size = 0x12000, scoped, tag = 'internal scratch']
  %s0 = inlined_call_operand.vmem [shape: f32[2,128], index: 0, kind: input, shape index: {}]
  %s1 = inlined_call_operand.hbm [shape: bf16[128,128], index: 1, kind: input, shape index: {}]
  %s2 = inlined_call_operand.vmem [shape: f32[1,128], index: 2, kind: input, shape index: {}]
  %s3 = inlined_call_operand.hbm [shape: f32[2,128], index: 3, kind: output, shape index: {}]
  %s4 = sld [smem:[#allocation0]]
  $region26: #{forward.1} parent=0
    _
  %s6 = ssub.s32 1, %s4
  %s7 = scalar_select 0, %s6, %s4
  $region1: #{forward.1} parent=0
    #allocation2 [shape = 'u8[32768]{0}', space=vmem, size = 0x8000, scoped, tag = 'input window, operand 1, single buffered']
    #allocation3 [shape = 's32[1]{0}', space=sflag, size = 0x4, scoped, tag = 'scoped memory for forward.1']
    #allocation4 [shape = 's32[1]{0}', space=sflag, size = 0x4, scoped, tag = 'scoped memory for forward.1']
    #allocation5 [shape = 'u8[1024]{0}', space=vmem, size = 0x400, scoped, tag = 'output window, operand 0, single buffered']
    %8 = vsyncpa [#allocation3], 0
    %9 = vsyncpa [#allocation4], 0
    // Predicated region
    $region2: #{forward.1} parent=1 // pred_check
      _
    $region3: #{forward.1} parent=1 // pred_check_branch
      %11 = sbr.rel (0) target = $region5
    $region4: #{forward.1} parent=1 // pred_region
      _
    $region5: #{forward.1} parent=1 // pred_fallthru
      _
    // Predicated region
    $region6: #{forward.1} parent=1 // pred_check
      _
    $region7: #{forward.1} parent=1 // pred_check_branch
      %13 = sbr.rel (0) target = $region9
    $region8: #{forward.1} parent=1 // pred_region
      %s15 = ssub.s32 1024, 1024
      %16 = vsyncadd [#allocation3], %s15
      %s17 = sshll.u32 [#allocation2], 4
      %s18 = int_to_ptr.vmem [resolvable:$true] %s17
      %23 = dma.hbm_to_vmem [thread:$0]  %s1, 1024, %s18, [#allocation3], 64, 64, 4
    $region9: #{forward.1} parent=1 // pred_fallthru
      _
    // Predicated region
    $region10: #{forward.1} parent=1 // pred_check
      _
    $region11: #{forward.1} parent=1 // pred_check_branch
      %25 = sbr.rel (0) target = $region13
    $region12: #{forward.1} parent=1 // pred_region
      _
    $region13: #{forward.1} parent=1 // pred_fallthru
      _
    // Predicated region
    $region14: #{forward.1} parent=1 // pred_check
      _
    $region15: #{forward.1} parent=1 // pred_check_branch
      %27 = sbr.rel (0) target = $region17
    $region16: #{forward.1} parent=1 // pred_region
      %28 = dma.done [#allocation3], 1024
    $region17: #{forward.1} parent=1 // pred_fallthru
      _
    %v30 = vld [vmem:[%s0] sm:$0x3]
    %v31 = vpack.c.bf16 %v30, %v30
    %v32 = vld [vmem:[#allocation2] sm:$0xf]
    %v33 = vld [vmem:[#allocation2 + $0x4] sm:$0xf]
    %v34 = vld [vmem:[#allocation2 + $0x8] sm:$0xf]
    %v35 = vld [vmem:[#allocation2 + $0xc] sm:$0xf]
    %v36 = vld [vmem:[#allocation2 + $0x10] sm:$0xf]
    %v37 = vld [vmem:[#allocation2 + $0x14] sm:$0xf]
    %v38 = vld [vmem:[#allocation2 + $0x18] sm:$0xf]
    %v39 = vld [vmem:[#allocation2 + $0x1c] sm:$0xf]
    %v40 = vld [vmem:[#allocation2 + $0x20] sm:$0xf]
    %v41 = vld [vmem:[#allocation2 + $0x24] sm:$0xf]
    %v42 = vld [vmem:[#allocation2 + $0x28] sm:$0xf]
    %v43 = vld [vmem:[#allocation2 + $0x2c] sm:$0xf]
    %v44 = vld [vmem:[#allocation2 + $0x30] sm:$0xf]
    %v45 = vld [vmem:[#allocation2 + $0x34] sm:$0xf]
    %v46 = vld [vmem:[#allocation2 + $0x38] sm:$0xf]
    %v47 = vld [vmem:[#allocation2 + $0x3c] sm:$0xf]
    %v48 = vld [vmem:[%s2] sm:$0x1]
    %v50 = vlaneseq
    %v51 = vshrl.u32 %v50, 7
    %v52 = vsub.s32 0, %v51
    %v53 = vrot.slane %v48, %v52
    %v71 = vunpack.c.l.b16 %v32
    %v72 = vunpack.c.l.b16 %v33
    %v73 = vunpack.c.l.b16 %v34
    %v74 = vunpack.c.l.b16 %v35
    %v75 = vunpack.c.l.b16 %v36
    %v76 = vunpack.c.l.b16 %v37
    %v77 = vunpack.c.l.b16 %v38
    %v78 = vunpack.c.l.b16 %v39
    %v79 = vunpack.c.l.b16 %v40
    %v80 = vunpack.c.l.b16 %v41
    %v81 = vunpack.c.l.b16 %v42
    %v82 = vunpack.c.l.b16 %v43
    %v83 = vunpack.c.l.b16 %v44
    %v84 = vunpack.c.l.b16 %v45
    %v85 = vunpack.c.l.b16 %v46
    %v86 = vunpack.c.l.b16 %v47
    %v87 = vpack.c.b16 %v72, %v71
    %v88 = vpack.c.b16 %v74, %v73
    %v89 = vpack.c.b16 %v76, %v75
    %v90 = vpack.c.b16 %v78, %v77
    %v91 = vpack.c.b16 %v80, %v79
    %v92 = vpack.c.b16 %v82, %v81
    %v93 = vpack.c.b16 %v84, %v83
    %v94 = vpack.c.b16 %v86, %v85
    %103 = vmatprep.subr.bf16.mxu0 0
    %104 = vmatpush1.bf16.msra.mxu0 %v94
    %105 = vmatprep.subr.bf16.mxu0 0
    %106 = vmatpush1.bf16.msra.mxu0 %v93
    %107 = vmatprep.subr.bf16.mxu0 0
    %108 = vmatpush1.bf16.msra.mxu0 %v92
    %109 = vmatprep.subr.bf16.mxu0 0
    %110 = vmatpush1.bf16.msra.mxu0 %v91
    %111 = vmatprep.subr.bf16.mxu0 0
    %112 = vmatpush1.bf16.msra.mxu0 %v90
    %113 = vmatprep.subr.bf16.mxu0 0
    %114 = vmatpush1.bf16.msra.mxu0 %v89
    %115 = vmatprep.subr.bf16.mxu0 0
    %116 = vmatpush1.bf16.msra.mxu0 %v88
    %117 = vmatprep.subr.bf16.mxu0 0
    %118 = vmatpush1.bf16.msra.mxu0 %v87
    %119 = vmatprep.subr.bf16.mxu0 0
    %120 = vmatpush2.bf16.msra.mxu0 0
    %121 = vmatprep.subr.bf16.mxu0 0
    %122 = vmatpush2.bf16.msra.mxu0 0
    %123 = vmatprep.subr.bf16.mxu0 0
    %124 = vmatpush2.bf16.msra.mxu0 0
    %125 = vmatprep.subr.bf16.mxu0 0
    %126 = vmatpush2.bf16.msra.mxu0 0
    %127 = vmatprep.subr.bf16.mxu0 0
    %128 = vmatpush2.bf16.msra.mxu0 0
    %129 = vmatprep.subr.bf16.mxu0 0
    %130 = vmatpush2.bf16.msra.mxu0 0
    %131 = vmatprep.subr.bf16.mxu0 0
    %132 = vmatpush2.bf16.msra.mxu0 0
    %133 = vmatprep.subr.bf16.mxu0 0
    %134 = vmatpush2.bf16.msra.mxu0 0
    %135 = vmatprep.mubr.bf16.mxu0 0
    %136 = vmatmul.mubr.bf16.gmra.mxu0 %v31
    %v137 = vpop.f32.mrf.mxu0
    %v138 = vadd.f32 %v53, %v137
    %v139 = vpop.f32.mrf.mxu0
    %v140 = vpop.f32.mrf.mxu0
    %v141 = vpop.f32.mrf.mxu0
    %142 = vdwg.mxu0
    %143 = vst [vmem:[#allocation5] sm:$0x3] %v138
    // Predicated region
    $region18: #{forward.1} parent=1 // pred_check
      _
    $region19: #{forward.1} parent=1 // pred_check_branch
      %145 = sbr.rel (0) target = $region21
    $region20: #{forward.1} parent=1 // pred_region
      %s147 = ssub.s32 32, 32
      %148 = vsyncadd [#allocation4], %s147
      %s150 = sshll.u32 [#allocation5], 4
      %s151 = int_to_ptr.vmem [resolvable:$true] %s150
      %153 = dma.vmem_to_hbm [thread:$0]  %s151, 32, %s3, [#allocation4]
    $region21: #{forward.1} parent=1 // pred_fallthru
      _
    // Predicated region
    $region22: #{forward.1} parent=1 // pred_check
      _
    $region23: #{forward.1} parent=1 // pred_check_branch
      %155 = sbr.rel (0) target = $region25
    $region24: #{forward.1} parent=1 // pred_region
      %156 = dma.done [#allocation4], 32
    $region25: #{forward.1} parent=1 // pred_fallthru
      _
    %157 = vsyncpa [#allocation3], 1
    %158 = vsyncpa [#allocation4], 1

</llo_original>
